<compile_context>
chip_gen: v7x
topology: tpu7x:2x2x1
jax: 0.10.0
libtpu: 0.0.40
codegen_flags: <defaults>
</compile_context>

<pallas_src>
import math
import re
from functools import partial

import jax
import jax.numpy as jnp
from jax.experimental import pallas as pl
from jax.experimental.pallas import tpu as pltpu

# Large finite negative instead of -inf keeps the softmax denominator strictly
# positive even for fully-masked rows of a diagonal tile.
_MASK_VALUE = -1e30


# ----------------------------------------------------------------------------
# Small helpers: tile picking, TPU generation / VMEM-limit selection.
# ----------------------------------------------------------------------------
def _pick_tile(n, target):
    """Largest tile <= target that divides n (multiple of 8), else full n."""
    if n <= target:
        return n
    for cand in (target, 512, 256, 128, 64, 32, 16, 8):
        if cand <= target and n % cand == 0:
            return cand
    return n


def _tpu_generation():
    try:
        kind = jax.devices()[0].device_kind.lower()
    except Exception:
        return 0
    m = re.search(r"(\d+)", kind)
    return int(m.group(1)) if m else 0


def _vmem_limit_bytes():
    gen = _tpu_generation()
    if gen >= 7:
        return 48 * 1024 * 1024        # v7x: 64 MiB physical VMEM per core
    if gen in (5, 6):
        return 100 * 1024 * 1024       # v5e/v6e: 128 MiB physical VMEM
    return None                        # unknown / older: keep compiler default


def _heads_per_block(num_heads, head_dim):
    """Smallest head group whose width is a multiple of 128 lanes; else all heads."""
    for hpb in range(1, num_heads + 1):
        if num_heads % hpb == 0 and (hpb * head_dim) % 128 == 0:
            return hpb
    return num_heads


# ----------------------------------------------------------------------------
# Fused QKV projection: x @ [Wq|Wk|Wv]^T -> three head-contiguous (B, T, d_out)
# outputs, written directly from the kernel (no post-hoc slicing / transposes).
# Weight is stacked (3, d_in, d_out), tiled over N and K with an f32 accumulator.
# ----------------------------------------------------------------------------
def _qkv_proj_kernel(x_ref, w_ref, q_ref, k_ref, v_ref, acc_ref):
    kk = pl.program_id(3)

    @pl.when(kk == 0)
    def _init():
        acc_ref[...] = jnp.zeros_like(acc_ref)

    x = x_ref[0]                                     # (tm, tkk) compute dtype
    for s in range(3):                               # q / k / v slots
        acc_ref[s] += jnp.dot(x, w_ref[s], preferred_element_type=jnp.float32)

    @pl.when(kk == pl.num_programs(3) - 1)
    def _store():
        q_ref[0] = acc_ref[0].astype(q_ref.dtype)
        k_ref[0] = acc_ref[1].astype(k_ref.dtype)
        v_ref[0] = acc_ref[2].astype(v_ref.dtype)


def _qkv_proj(x, wqkv, out_dtype):
    B, T, d_in = x.shape
    d_out = wqkv.shape[2]
    tm = _pick_tile(T, 256)
    tn = _pick_tile(d_out, 512)
    tkk = _pick_tile(d_in, 512)
    grid = (B, T // tm, d_out // tn, d_in // tkk)

    out_sds = jax.ShapeDtypeStruct((B, T, d_out), out_dtype)
    return pl.pallas_call(
        _qkv_proj_kernel,
        out_shape=(out_sds, out_sds, out_sds),
        grid_spec=pltpu.PrefetchScalarGridSpec(
            num_scalar_prefetch=0,
            grid=grid,
            in_specs=[
                pl.BlockSpec((1, tm, tkk), lambda b, i, j, kk: (b, i, kk)),
                pl.BlockSpec((3, tkk, tn), lambda b, i, j, kk: (0, kk, j)),
            ],
            out_specs=(
                pl.BlockSpec((1, tm, tn), lambda b, i, j, kk: (b, i, j)),
                pl.BlockSpec((1, tm, tn), lambda b, i, j, kk: (b, i, j)),
                pl.BlockSpec((1, tm, tn), lambda b, i, j, kk: (b, i, j)),
            ),
            scratch_shapes=[pltpu.VMEM((3, tm, tn), jnp.float32)],
        ),
        compiler_params=pltpu.CompilerParams(
            dimension_semantics=("parallel", "parallel", "parallel", "arbitrary"),
            vmem_limit_bytes=_vmem_limit_bytes()),
    )(x, wqkv)


# ----------------------------------------------------------------------------
# Output projection: ctx @ Wo^T + b, tiled over N and K with f32 accumulator.
# ----------------------------------------------------------------------------
def _out_proj_kernel(x_ref, w_ref, b_ref, o_ref, acc_ref):
    kk = pl.program_id(3)

    @pl.when(kk == 0)
    def _init():
        acc_ref[...] = jnp.zeros_like(acc_ref)

    acc_ref[...] += jnp.dot(x_ref[0], w_ref[...], preferred_element_type=jnp.float32)

    @pl.when(kk == pl.num_programs(3) - 1)
    def _store():
        o_ref[0] = (acc_ref[...] + b_ref[...]).astype(o_ref.dtype)


def _out_proj(x, w_t, bias, out_dtype):
    B, T, d_in = x.shape
    d_o = w_t.shape[1]
    tm = _pick_tile(T, 256)
    tn = _pick_tile(d_o, 512)
    tkk = _pick_tile(d_in, 512)
    grid = (B, T // tm, d_o // tn, d_in // tkk)

    return pl.pallas_call(
        _out_proj_kernel,
        out_shape=jax.ShapeDtypeStruct((B, T, d_o), out_dtype),
        grid_spec=pltpu.PrefetchScalarGridSpec(
            num_scalar_prefetch=0,
            grid=grid,
            in_specs=[
                pl.BlockSpec((1, tm, tkk), lambda b, i, j, kk: (b, i, kk)),
                pl.BlockSpec((tkk, tn), lambda b, i, j, kk: (kk, j)),
                pl.BlockSpec((1, tn), lambda b, i, j, kk: (0, j)),
            ],
            out_specs=pl.BlockSpec((1, tm, tn), lambda b, i, j, kk: (b, i, j)),
            scratch_shapes=[pltpu.VMEM((tm, tn), jnp.float32)],
        ),
        compiler_params=pltpu.CompilerParams(
            dimension_semantics=("parallel", "parallel", "parallel", "arbitrary"),
            vmem_limit_bytes=_vmem_limit_bytes()),
    )(x, w_t, bias)


# ----------------------------------------------------------------------------
# Flash-attention forward (causal, online softmax, deferred normalization).
# q, k, v, out: (B, T, d_out) head-contiguous.  Grid: (B, head-groups, steps)
# where `steps` enumerates only the (q-tile, k-tile) pairs at-or-below the
# causal diagonal via scalar-prefetched lookup tables (no wasted DMA / steps).
# ----------------------------------------------------------------------------
def _flash_kernel(qi_tab_ref, ki_tab_ref, q_ref, k_ref, v_ref, o_ref,
                  m_sc, l_sc, acc_sc, *, tq, tk, hd, hpb, exp_dtype, approx_recip):
    s_idx = pl.program_id(2)
    qi = qi_tab_ref[s_idx]
    ki = ki_tab_ref[s_idx]
    q_start = qi * tq
    k_start = ki * tk

    @pl.when(ki == 0)
    def _init():
        m_sc[...] = jnp.full_like(m_sc, -jnp.inf)
        l_sc[...] = jnp.zeros_like(l_sc)
        acc_sc[...] = jnp.zeros_like(acc_sc)

    def update(apply_mask):
        if apply_mask:
            row = q_start + jax.lax.broadcasted_iota(jnp.int32, (tq, tk), 0)
            col = k_start + jax.lax.broadcasted_iota(jnp.int32, (tq, tk), 1)
            causal = col > row
        for j in range(hpb):                           # static unroll over heads
            lo = j * hd
            q_j = q_ref[0, :, lo:lo + hd]              # (tq, hd) compute dtype
            k_j = k_ref[0, :, lo:lo + hd]              # (tk, hd)
            v_j = v_ref[0, :, lo:lo + hd]              # (tk, hd)

            # sm_scale is already folded into the Q projection weights.
            s = jax.lax.dot_general(q_j, k_j, (((1,), (1,)), ((), ())),
                                    preferred_element_type=jnp.float32)
            if apply_mask:
                s = jnp.where(causal, _MASK_VALUE, s)

            m_prev = m_sc[j]
            m_new = jnp.maximum(m_prev, jnp.max(s, axis=-1, keepdims=True))
            alpha = jnp.exp(m_prev - m_new)
            # exp in bf16 on v6e/v7x (EUP bf16); stats / accumulators stay f32.
            p = jnp.exp((s - m_new).astype(exp_dtype))
            l_sc[j] = alpha * l_sc[j] + jnp.sum(p.astype(jnp.float32),
                                                axis=-1, keepdims=True)
            pv = jnp.dot(p.astype(v_j.dtype), v_j,
                         preferred_element_type=jnp.float32)
            acc_sc[j] = alpha * acc_sc[j] + pv
            m_sc[j] = m_new

    # Only diagonal-straddling tiles need the causal mask; interior tiles skip
    # the iota/compare/select VPU work entirely.
    needs_mask = (k_start + tk - 1) > q_start

    @pl.when(needs_mask)
    def _diag():
        update(True)

    @pl.when(jnp.logical_not(needs_mask))
    def _interior():
        update(False)

    last_ki = ((qi + 1) * tq - 1) // tk
    @pl.when(ki == last_ki)
    def _finalize():
        outs = []
        for j in range(hpb):
            if approx_recip:
                outs.append(acc_sc[j] * pl.reciprocal(l_sc[j], approx=True))
            else:
                outs.append(acc_sc[j] / l_sc[j])
        block = outs[0] if hpb == 1 else jnp.concatenate(outs, axis=-1)
        o_ref[0] = block.astype(o_ref.dtype)           # single lane-dense store


def _flash_attention(q, k, v, *, num_heads, compute_dtype):
    B, T, d_out = q.shape
    hd = d_out // num_heads
    hpb = _heads_per_block(num_heads, hd)              # heads per grid step
    ng = num_heads // hpb
    bd = hpb * hd                                      # block width (lanes)

    tq = _pick_tile(T, 512)
    tk = _pick_tile(T, 256)
    nq, nk = T // tq, T // tk

    # Triangular step table: only (qi, ki) pairs at-or-below the diagonal exist.
    qis, kis = [], []
    for qi in range(nq):
        last = min(((qi + 1) * tq - 1) // tk, nk - 1)
        for ki in range(last + 1):
            qis.append(qi)
            kis.append(ki)
    qi_tab = jnp.asarray(qis, dtype=jnp.int32)
    ki_tab = jnp.asarray(kis, dtype=jnp.int32)
    n_steps = len(qis)

    cd = jnp.dtype(compute_dtype)
    is_bf16 = cd == jnp.dtype(jnp.bfloat16)
    gen = _tpu_generation()
    exp_dtype = jnp.bfloat16 if (is_bf16 and gen >= 6) else jnp.float32
    approx_recip = is_bf16

    kernel = partial(_flash_kernel, tq=tq, tk=tk, hd=hd, hpb=hpb,
                     exp_dtype=exp_dtype, approx_recip=approx_recip)

    return pl.pallas_call(
        kernel,
        out_shape=jax.ShapeDtypeStruct((B, T, d_out), compute_dtype),
        grid_spec=pltpu.PrefetchScalarGridSpec(
            num_scalar_prefetch=2,
            grid=(B, ng, n_steps),
            in_specs=[
                pl.BlockSpec((1, tq, bd), lambda b, g, s, qt, kt: (b, qt[s], g)),
                pl.BlockSpec((1, tk, bd), lambda b, g, s, qt, kt: (b, kt[s], g)),
                pl.BlockSpec((1, tk, bd), lambda b, g, s, qt, kt: (b, kt[s], g)),
            ],
            out_specs=pl.BlockSpec((1, tq, bd),
                                   lambda b, g, s, qt, kt: (b, qt[s], g)),
            scratch_shapes=[
                pltpu.VMEM((hpb, tq, 1), jnp.float32),   # running max m
                pltpu.VMEM((hpb, tq, 1), jnp.float32),   # running denom l
                pltpu.VMEM((hpb, tq, hd), jnp.float32),  # un-normalized acc
            ],
        ),
        compiler_params=pltpu.CompilerParams(
            dimension_semantics=("parallel", "parallel", "arbitrary"),
            vmem_limit_bytes=_vmem_limit_bytes()),
    )(qi_tab, ki_tab, q, k, v)


# ----------------------------------------------------------------------------
# Full module forward: fused QKV projection -> causal flash attention ->
# output projection.  bf16 MXU operands by default (f32 accumulation).
# ----------------------------------------------------------------------------
def multi_head_attention(x, wq, wk, wv, wo, bo, *, num_heads,
                         compute_dtype=jnp.bfloat16):
    B, T, d_in = x.shape
    d_out = wq.shape[0]
    assert d_out % num_heads == 0
    hd = d_out // num_heads
    sm_scale = 1.0 / math.sqrt(hd)

    # One-time weight prep: fold sm_scale into the Q rows, pre-transpose to
    # (K, N), stack as (3, d_in, d_out) so the projection kernel tiles N / K.
    wqkv = jnp.stack([(wq * sm_scale).T, wk.T, wv.T], axis=0).astype(compute_dtype)
    wo_t = wo.T.astype(compute_dtype)
    bo2 = bo.reshape(1, d_out).astype(jnp.float32)
    x_c = x.astype(compute_dtype)

    # 1) fused QKV projection -> three head-contiguous (B, T, d_out) tensors
    #    (qkv_bias=False in the reference module); no reshuffle passes needed.
    q, k, v = _qkv_proj(x_c, wqkv, out_dtype=compute_dtype)

    # 2) causal flash attention, output written directly as a lane-dense
    #    (B, T, d_out) slab (softmax stats f32, normalization deferred).
    # TODO(synk): training-mode dropout on attention weights not implemented
    #             (nn.Dropout is identity in eval mode).
    ctx = _flash_attention(q, k, v, num_heads=num_heads,
                           compute_dtype=compute_dtype)

    # 3) output projection (has bias)
    return _out_proj(ctx, wo_t, bo2, out_dtype=x.dtype)


# ----------------------------------------------------------------------------
# Pure-JAX reference (mirrors the PyTorch module forward, eval mode).
# ----------------------------------------------------------------------------
def _reference(x, wq, wk, wv, wo, bo, num_heads):
    B, T, d_in = x.shape
    d_out = wq.shape[0]
    hd = d_out // num_heads
    q = jnp.einsum('btd,od->bto', x, wq).reshape(B, T, num_heads, hd)
    k = jnp.einsum('btd,od->bto', x, wk).reshape(B, T, num_heads, hd)
    v = jnp.einsum('btd,od->bto', x, wv).reshape(B, T, num_heads, hd)
    q, k, v = (a.transpose(0, 2, 1, 3) for a in (q, k, v))     # (B,H,T,hd)
    s = jnp.einsum('bhqd,bhkd->bhqk', q, k) / math.sqrt(hd)
    mask = jnp.triu(jnp.ones((T, T), dtype=bool), k=1)
    s = jnp.where(mask[None, None], -jnp.inf, s)
    w = jax.nn.softmax(s, axis=-1)
    ctx = jnp.einsum('bhqk,bhkd->bhqd', w, v).transpose(0, 2, 1, 3).reshape(B, T, d_out)
    return jnp.einsum('bto,po->btp', ctx, wo) + bo[None, None]


if __name__ == "__main__":
    # Small shapes consistent with the module's forward.
    B, T, d_in = 2, 8, 32
    d_out, num_heads = 32, 4

    key = jax.random.PRNGKey(0)
    kx, kq, kk, kv, ko, kb = jax.random.split(key, 6)

    x = jax.random.normal(kx, (B, T, d_in), dtype=jnp.float32)
    # PyTorch Linear weight layout: (d_out, d_in)
    wq = jax.random.normal(kq, (d_out, d_in), dtype=jnp.float32) * 0.1
    wk = jax.random.normal(kk, (d_out, d_in), dtype=jnp.float32) * 0.1
    wv = jax.random.normal(kv, (d_out, d_in), dtype=jnp.float32) * 0.1
    wo = jax.random.normal(ko, (d_out, d_out), dtype=jnp.float32) * 0.1
    bo = jax.random.normal(kb, (d_out,), dtype=jnp.float32) * 0.1

    ref = _reference(x, wq, wk, wv, wo, bo, num_heads)

    # f32 parity/debug path: tight numerical agreement with the reference.
    out_f32 = multi_head_attention(x, wq, wk, wv, wo, bo, num_heads=num_heads,
                                   compute_dtype=jnp.float32)
    out_f32 = jax.block_until_ready(out_f32)
    assert out_f32.shape == (B, T, d_out)
    assert jnp.allclose(out_f32, ref, atol=1e-4, rtol=1e-4), "f32 mismatch vs reference"

    # Default bf16 MXU path (f32 accumulation / softmax stats): looser tolerance.
    out_bf16 = multi_head_attention(x, wq, wk, wv, wo, bo, num_heads=num_heads)
    out_bf16 = jax.block_until_ready(out_bf16)
    assert out_bf16.shape == (B, T, d_out)
    assert jnp.allclose(out_bf16, ref, atol=1e-1, rtol=1e-1), "bf16 mismatch vs reference"

    print("KERNEL_OK")
</pallas_src>

<mosaic_0001>
module attributes {stable_mosaic.version = 11 : i64} {
  func.func @_qkv_proj_kernel(%arg0: i32, %arg1: i32, %arg2: i32, %arg3: i32, %arg4: memref<1x8x32xf32, #tpu.memory_space<vmem>>, %arg5: memref<3x32x32xf32, #tpu.memory_space<vmem>>, %arg6: memref<1x8x32xf32, #tpu.memory_space<vmem>>, %arg7: memref<1x8x32xf32, #tpu.memory_space<vmem>>, %arg8: memref<1x8x32xf32, #tpu.memory_space<vmem>>, %arg9: memref<3x8x32xf32, #tpu.memory_space<vmem>>) attributes {dimension_semantics = [#tpu.dimension_semantics<parallel>, #tpu.dimension_semantics<parallel>, #tpu.dimension_semantics<parallel>, #tpu.dimension_semantics<arbitrary>], iteration_bounds = array<i64: 2, 1, 1, 1>, scalar_prefetch = 0 : i64, scratch_operands = 1 : i64, tpu.core_type = #tpu.core_type<tc>, window_params = [{transform_indices = @transform_0, window_bounds = array<i64: 1, 8, 32>}, {transform_indices = @transform_1, window_bounds = array<i64: 3, 32, 32>}, {transform_indices = @transform_2, window_bounds = array<i64: 1, 8, 32>}, {transform_indices = @transform_3, window_bounds = array<i64: 1, 8, 32>}, {transform_indices = @transform_4, window_bounds = array<i64: 1, 8, 32>}]} {
    %c0_i32 = arith.constant 0 : i32
    %0 = arith.cmpi eq, %arg3, %c0_i32 : i32
    %1 = arith.extui %0 : i1 to i32
    %c0_i32_0 = arith.constant 0 : i32
    %2 = arith.cmpi ne, %1, %c0_i32_0 : i32
    scf.if %2 {
      %cst_32 = arith.constant 0.000000e+00 : f32
      %35 = vector.broadcast %cst_32 : f32 to vector<3x8x32xf32>
      %c0_33 = arith.constant 0 : index
      %c0_34 = arith.constant 0 : index
      %c0_35 = arith.constant 0 : index
      %36 = vector.load %arg9[%c0_33, %c0_34, %c0_35] : memref<3x8x32xf32, #tpu.memory_space<vmem>>, vector<3x8x32xf32>
      tpu.vector_store %arg9[%c0_33, %c0_34, %c0_35], %35 {strides = array<i32>} : memref<3x8x32xf32, #tpu.memory_space<vmem>>, vector<3x8x32xf32>,
    } else {
    }
    %c0 = arith.constant 0 : index
    %c0_1 = arith.constant 0 : index
    %c0_2 = arith.constant 0 : index
    %3 = vector.load %arg4[%c0, %c0_1, %c0_2] : memref<1x8x32xf32, #tpu.memory_space<vmem>>, vector<1x8x32xf32>
    %4 = vector.shape_cast %3 : vector<1x8x32xf32> to vector<8x32xf32>
    %c0_3 = arith.constant 0 : index
    %c0_4 = arith.constant 0 : index
    %c0_5 = arith.constant 0 : index
    %5 = vector.load %arg9[%c0_3, %c0_4, %c0_5] : memref<3x8x32xf32, #tpu.memory_space<vmem>>, vector<1x8x32xf32>
    %6 = vector.shape_cast %5 : vector<1x8x32xf32> to vector<8x32xf32>
    %c0_6 = arith.constant 0 : index
    %c0_7 = arith.constant 0 : index
    %c0_8 = arith.constant 0 : index
    %7 = vector.load %arg5[%c0_6, %c0_7, %c0_8] : memref<3x32x32xf32, #tpu.memory_space<vmem>>, vector<1x32x32xf32>
    %8 = vector.shape_cast %7 : vector<1x32x32xf32> to vector<32x32xf32>
    %cst = arith.constant dense<0.000000e+00> : vector<8x32xf32>
    %9 = tpu.matmul %4, %8, %cst {dimension_numbers = #tpu.dot_dimension_numbers<[1], [0], [0], [1], [0, 0, 1, 1], [], []>} : vector<8x32xf32>, vector<32x32xf32>, vector<8x32xf32> -> vector<8x32xf32>
    %10 = arith.addf %6, %9 : vector<8x32xf32>
    %c0_9 = arith.constant 0 : index
    %c0_10 = arith.constant 0 : index
    %c0_11 = arith.constant 0 : index
    %11 = vector.load %arg9[%c0_9, %c0_10, %c0_11] : memref<3x8x32xf32, #tpu.memory_space<vmem>>, vector<1x8x32xf32>
    %12 = vector.shape_cast %11 : vector<1x8x32xf32> to vector<8x32xf32>
    %13 = vector.shape_cast %10 : vector<8x32xf32> to vector<1x8x32xf32>
    tpu.vector_store %arg9[%c0_9, %c0_10, %c0_11], %13 {strides = array<i32>} : memref<3x8x32xf32, #tpu.memory_space<vmem>>, vector<1x8x32xf32>,
    %c1 = arith.constant 1 : index
    %c0_12 = arith.constant 0 : index
    %c0_13 = arith.constant 0 : index
    %14 = vector.load %arg9[%c1, %c0_12, %c0_13] : memref<3x8x32xf32, #tpu.memory_space<vmem>>, vector<1x8x32xf32>
    %15 = vector.shape_cast %14 : vector<1x8x32xf32> to vector<8x32xf32>
    %c1_14 = arith.constant 1 : index
    %c0_15 = arith.constant 0 : index
    %c0_16 = arith.constant 0 : index
    %16 = vector.load %arg5[%c1_14, %c0_15, %c0_16] : memref<3x32x32xf32, #tpu.memory_space<vmem>>, vector<1x32x32xf32>
    %17 = vector.shape_cast %16 : vector<1x32x32xf32> to vector<32x32xf32>
    %cst_17 = arith.constant dense<0.000000e+00> : vector<8x32xf32>
    %18 = tpu.matmul %4, %17, %cst_17 {dimension_numbers = #tpu.dot_dimension_numbers<[1], [0], [0], [1], [0, 0, 1, 1], [], []>} : vector<8x32xf32>, vector<32x32xf32>, vector<8x32xf32> -> vector<8x32xf32>
    %19 = arith.addf %15, %18 : vector<8x32xf32>
    %c1_18 = arith.constant 1 : index
    %c0_19 = arith.constant 0 : index
    %c0_20 = arith.constant 0 : index
    %20 = vector.load %arg9[%c1_18, %c0_19, %c0_20] : memref<3x8x32xf32, #tpu.memory_space<vmem>>, vector<1x8x32xf32>
    %21 = vector.shape_cast %20 : vector<1x8x32xf32> to vector<8x32xf32>
    %22 = vector.shape_cast %19 : vector<8x32xf32> to vector<1x8x32xf32>
    tpu.vector_store %arg9[%c1_18, %c0_19, %c0_20], %22 {strides = array<i32>} : memref<3x8x32xf32, #tpu.memory_space<vmem>>, vector<1x8x32xf32>,
    %c2 = arith.constant 2 : index
    %c0_21 = arith.constant 0 : index
    %c0_22 = arith.constant 0 : index
    %23 = vector.load %arg9[%c2, %c0_21, %c0_22] : memref<3x8x32xf32, #tpu.memory_space<vmem>>, vector<1x8x32xf32>
    %24 = vector.shape_cast %23 : vector<1x8x32xf32> to vector<8x32xf32>
    %c2_23 = arith.constant 2 : index
    %c0_24 = arith.constant 0 : index
    %c0_25 = arith.constant 0 : index
    %25 = vector.load %arg5[%c2_23, %c0_24, %c0_25] : memref<3x32x32xf32, #tpu.memory_space<vmem>>, vector<1x32x32xf32>
    %26 = vector.shape_cast %25 : vector<1x32x32xf32> to vector<32x32xf32>
    %cst_26 = arith.constant dense<0.000000e+00> : vector<8x32xf32>
    %27 = tpu.matmul %4, %26, %cst_26 {dimension_numbers = #tpu.dot_dimension_numbers<[1], [0], [0], [1], [0, 0, 1, 1], [], []>} : vector<8x32xf32>, vector<32x32xf32>, vector<8x32xf32> -> vector<8x32xf32>
    %28 = arith.addf %24, %27 : vector<8x32xf32>
    %c2_27 = arith.constant 2 : index
    %c0_28 = arith.constant 0 : index
    %c0_29 = arith.constant 0 : index
    %29 = vector.load %arg9[%c2_27, %c0_28, %c0_29] : memref<3x8x32xf32, #tpu.memory_space<vmem>>, vector<1x8x32xf32>
    %30 = vector.shape_cast %29 : vector<1x8x32xf32> to vector<8x32xf32>
    %31 = vector.shape_cast %28 : vector<8x32xf32> to vector<1x8x32xf32>
    tpu.vector_store %arg9[%c2_27, %c0_28, %c0_29], %31 {strides = array<i32>} : memref<3x8x32xf32, #tpu.memory_space<vmem>>, vector<1x8x32xf32>,
    %c0_i32_30 = arith.constant 0 : i32
    %32 = arith.cmpi eq, %arg3, %c0_i32_30 : i32
    %33 = arith.extui %32 : i1 to i32
    %c0_i32_31 = arith.constant 0 : i32
    %34 = arith.cmpi ne, %33, %c0_i32_31 : i32
    scf.if %34 {
      %c0_32 = arith.constant 0 : index
      %c0_33 = arith.constant 0 : index
      %c0_34 = arith.constant 0 : index
      %35 = vector.load %arg9[%c0_32, %c0_33, %c0_34] : memref<3x8x32xf32, #tpu.memory_space<vmem>>, vector<1x8x32xf32>
      %36 = vector.shape_cast %35 : vector<1x8x32xf32> to vector<8x32xf32>
      %c0_35 = arith.constant 0 : index
      %c0_36 = arith.constant 0 : index
      %c0_37 = arith.constant 0 : index
      %37 = vector.load %arg6[%c0_35, %c0_36, %c0_37] : memref<1x8x32xf32, #tpu.memory_space<vmem>>, vector<1x8x32xf32>
      %38 = vector.shape_cast %37 : vector<1x8x32xf32> to vector<8x32xf32>
      %39 = vector.shape_cast %36 : vector<8x32xf32> to vector<1x8x32xf32>
      tpu.vector_store %arg6[%c0_35, %c0_36, %c0_37], %39 {strides = array<i32>} : memref<1x8x32xf32, #tpu.memory_space<vmem>>, vector<1x8x32xf32>,
      %c1_38 = arith.constant 1 : index
      %c0_39 = arith.constant 0 : index
      %c0_40 = arith.constant 0 : index
      %40 = vector.load %arg9[%c1_38, %c0_39, %c0_40] : memref<3x8x32xf32, #tpu.memory_space<vmem>>, vector<1x8x32xf32>
      %41 = vector.shape_cast %40 : vector<1x8x32xf32> to vector<8x32xf32>
      %c0_41 = arith.constant 0 : index
      %c0_42 = arith.constant 0 : index
      %c0_43 = arith.constant 0 : index
      %42 = vector.load %arg7[%c0_41, %c0_42, %c0_43] : memref<1x8x32xf32, #tpu.memory_space<vmem>>, vector<1x8x32xf32>
      %43 = vector.shape_cast %42 : vector<1x8x32xf32> to vector<8x32xf32>
      %44 = vector.shape_cast %41 : vector<8x32xf32> to vector<1x8x32xf32>
      tpu.vector_store %arg7[%c0_41, %c0_42, %c0_43], %44 {strides = array<i32>} : memref<1x8x32xf32, #tpu.memory_space<vmem>>, vector<1x8x32xf32>,
      %c2_44 = arith.constant 2 : index
      %c0_45 = arith.constant 0 : index
      %c0_46 = arith.constant 0 : index
      %45 = vector.load %arg9[%c2_44, %c0_45, %c0_46] : memref<3x8x32xf32, #tpu.memory_space<vmem>>, vector<1x8x32xf32>
      %46 = vector.shape_cast %45 : vector<1x8x32xf32> to vector<8x32xf32>
      %c0_47 = arith.constant 0 : index
      %c0_48 = arith.constant 0 : index
      %c0_49 = arith.constant 0 : index
      %47 = vector.load %arg8[%c0_47, %c0_48, %c0_49] : memref<1x8x32xf32, #tpu.memory_space<vmem>>, vector<1x8x32xf32>
      %48 = vector.shape_cast %47 : vector<1x8x32xf32> to vector<8x32xf32>
      %49 = vector.shape_cast %46 : vector<8x32xf32> to vector<1x8x32xf32>
      tpu.vector_store %arg8[%c0_47, %c0_48, %c0_49], %49 {strides = array<i32>} : memref<1x8x32xf32, #tpu.memory_space<vmem>>, vector<1x8x32xf32>,
    } else {
    }
    return
  }
  func.func @transform_0(%arg0: i32, %arg1: i32, %arg2: i32, %arg3: i32) -> (i32, i32, i32) {
    %c0_i32 = arith.constant 0 : i32
    return %arg0, %arg1, %arg3 : i32, i32, i32
  }
  func.func @transform_1(%arg0: i32, %arg1: i32, %arg2: i32, %arg3: i32) -> (i32, i32, i32) {
    %c0_i32 = arith.constant 0 : i32
    %c0_i32_0 = arith.constant 0 : i32
    return %c0_i32, %arg3, %arg2 : i32, i32, i32
  }
  func.func @transform_2(%arg0: i32, %arg1: i32, %arg2: i32, %arg3: i32) -> (i32, i32, i32) {
    %c0_i32 = arith.constant 0 : i32
    return %arg0, %arg1, %arg2 : i32, i32, i32
  }
  func.func @transform_3(%arg0: i32, %arg1: i32, %arg2: i32, %arg3: i32) -> (i32, i32, i32) {
    %c0_i32 = arith.constant 0 : i32
    return %arg0, %arg1, %arg2 : i32, i32, i32
  }
  func.func @transform_4(%arg0: i32, %arg1: i32, %arg2: i32, %arg3: i32) -> (i32, i32, i32) {
    %c0_i32 = arith.constant 0 : i32
    return %arg0, %arg1, %arg2 : i32, i32, i32
  }
}

</mosaic_0001>

<llo_original>
// kernel: tpu_custom_call.1
$region0: #{tpu_custom_call.1}
  #allocation0 [shape = 'u32[]', space=smem, size = 0x4, offset = 0x4, fixed_abs, tag = 'smem constant byte address 0x4 - core index']
  #allocation1 [shape = 'u32[144,128]{1,0:T(1,128)}', space=vmem, size = 0x12000, scoped, tag = 'internal scratch']
  #allocation2 [shape = 'f32[3,8,32]{2,1,0:T(8,128)}', space=vmem, size = 0x3000, scoped, tag = 'scratch operand']
  %s0 = inlined_call_operand.hbm [shape: f32[2,8,32], index: 0, kind: input, shape index: {}]
  %s1 = inlined_call_operand.hbm [shape: f32[3,32,32], index: 1, kind: input, shape index: {}]
  %s2 = inlined_call_operand.hbm [shape: f32[2,8,32], index: 2, kind: output, shape index: {0}]
  %s3 = inlined_call_operand.hbm [shape: f32[2,8,32], index: 3, kind: output, shape index: {1}]
  %s4 = inlined_call_operand.hbm [shape: f32[2,8,32], index: 4, kind: output, shape index: {2}]
  %5 = xla_tuple %s2, %s3, %s4
  %s6 = sld [smem:[#allocation0]]
  $region73: #{tpu_custom_call.1} parent=0
    _
  %s8 = ssub.s32 1, %s6
  %s9 = scalar_select 0, %s8, %s6
  $region1: #{tpu_custom_call.1} parent=0
    #allocation3 [shape = 'u8[8192]{0}', space=vmem, size = 0x2000, scoped, tag = 'input window, operand 0']
    #allocation4 [shape = 's32[2]{0}', space=sflag, size = 0x8, scoped, tag = 'scoped memory for tpu_custom_call.1']
    #allocation5 [shape = 's32[2]{0}', space=sflag, size = 0x8, scoped, tag = 'scoped memory for tpu_custom_call.1']
    #allocation6 [shape = 'u8[49152]{0}', space=vmem, size = 0xc000, scoped, tag = 'input window, operand 1, single buffered']
    #allocation7 [shape = 's32[1]{0}', space=sflag, size = 0x4, scoped, tag = 'scoped memory for tpu_custom_call.1']
    #allocation8 [shape = 'u8[8192]{0}', space=vmem, size = 0x2000, scoped, tag = 'output window, operand 0']
    #allocation9 [shape = 'u8[8192]{0}', space=vmem, size = 0x2000, scoped, tag = 'output window, operand 1']
    #allocation10 [shape = 's32[2]{0}', space=sflag, size = 0x8, scoped, tag = 'scoped memory for tpu_custom_call.1']
    #allocation11 [shape = 'u8[8192]{0}', space=vmem, size = 0x2000, scoped, tag = 'output window, operand 2']
    %10 = vsyncpa [#allocation4], 0
    %s11 = scalar_lea.sflag [#allocation4], 1
    %12 = vsyncpa %s11, 0
    %13 = vsyncpa [#allocation7], 0
    %14 = vsyncpa [#allocation5], 0
    %s15 = scalar_lea.sflag [#allocation5], 1
    %16 = vsyncpa %s15, 0
    %17 = vsyncpa [#allocation10], 0
    %s18 = scalar_lea.sflag [#allocation10], 1
    %19 = vsyncpa %s18, 0
    loop: start=0, step=1, limit=4
    $region2: #{tpu_custom_call.1} parent=1 // loop_pre_header
      _
    $region3: #{tpu_custom_call.1} parent=1 // loop_header
      %s21 = sphi 0, %s25
      %p22 = scmp.ge.s32.totalorder %s21, 4
      %s28 = sphi 0, %s54
      %s29 = sphi 0, %s50
      %s30 = sphi 0, %s46
      %s31 = sphi 0, %s42
      %s32 = sphi 0, %s28
      %s33 = sphi 0, %s29
      %s34 = sphi 0, %s30
      %s35 = sphi 0, %s31
      %s36 = sphi 0, %s32
      %s37 = sphi 0, %s33
      %s38 = sphi 0, %s34
      %s39 = sphi 0, %s35
      %s61 = sphi 0, %s63
      %s64 = sphi 0, %s61
      %s65 = sphi 0, %s64
      %s81 = sphi 0, %s65
      %s89 = sphi 0, %s91
      %s92 = sphi 0, %s89
      %s93 = sphi 0, %s92
      %s109 = sphi 0, %s93
      %s119 = sphi 0, %s121
      %s122 = sphi 0, %s119
      %s123 = sphi 0, %s122
      %s139 = sphi 0, %s123
      %s149 = sphi 0, %s151
      %s152 = sphi 0, %s149
      %s153 = sphi 0, %s152
      %s169 = sphi 0, %s153
      %s179 = sphi 0, %s181
      %s182 = sphi 0, %s179
      %s183 = sphi 0, %s182
      %s199 = sphi 0, %s183
    $region4: #{tpu_custom_call.1} parent=1 // loop_header_branch
      %24 = sbr.rel (%p22) target = $region8
    $region5: #{tpu_custom_call.1} parent=1 // loop_body
      %s26 = ssub.s32 %s21, 1
      %s27 = ssub.s32 %s21, 2
      %s40 = sadd.s32 1, %s31
      %p41 = scmp.ge.s32.totalorder %s40, 1
      %s42 = scalar_select %p41, 0, %s40
      %s43 = sadd.s32 1, %s30
      %s44 = scalar_select %p41, %s43, %s30
      %p45 = scmp.ge.s32.totalorder %s44, 1
      %s46 = scalar_select %p45, 0, %s44
      %s47 = sadd.s32 1, %s29
      %s48 = scalar_select %p45, %s47, %s29
      %p49 = scmp.ge.s32.totalorder %s48, 1
      %s50 = scalar_select %p49, 0, %s48
      %s51 = sadd.s32 1, %s28
      %s52 = scalar_select %p49, %s51, %s28
      %p53 = scmp.ge.s32.totalorder %s52, 2
      %s54 = scalar_select %p53, 0, %s52
      %s55 = ssub.s32 %s28, %s54
      %s56 = ssub.s32 %s29, %s50
      %s57 = sor.u32 %s55, %s56
      %s58 = ssub.s32 %s31, %s42
      %s59 = sor.u32 %s57, %s58
      %p60 = scmp.eq.s32.totalorder %s59, 0
      %s62 = sadd.s32 %s61, 1
      %s63 = scalar_select %p60, %s61, %s62
      %p66 = pneg %p60
      %p67 = scmp.eq.s32.totalorder %s21, 1
      %p68 = por %p66, %p67
      %p69 = scmp.ne.s32.totalorder %s61, %s64
      %p70 = scmp.eq.s32.totalorder %s21, 0
      %p71 = por %p69, %p70
      %p72 = scmp.ne.s32.totalorder %s61, %s64
      %p73 = scmp.eq.s32.totalorder %s26, 1
      %p74 = por %p72, %p73
      %p75 = scmp.ne.s32.totalorder %s64, %s65
      %p76 = scmp.eq.s32.totalorder %s26, 0
      %p77 = por %p75, %p76
      %p78 = scmp.ne.s32.totalorder %s64, %s65
      %p79 = scmp.eq.s32.totalorder %s27, 1
      %p80 = por %p78, %p79
      %p82 = scmp.ne.s32.totalorder %s65, %s81
      %p83 = scmp.eq.s32.totalorder %s27, 0
      %p84 = por %p82, %p83
      %s85 = ssub.s32 %s31, %s42
      %s86 = ssub.s32 %s30, %s46
      %s87 = sor.u32 %s85, %s86
      %p88 = scmp.eq.s32.totalorder %s87, 0
      %s90 = sadd.s32 %s89, 1
      %s91 = scalar_select %p88, %s89, %s90
      %p94 = pneg %p88
      %p95 = scmp.eq.s32.totalorder %s21, 1
      %p96 = por %p94, %p95
      %p97 = scmp.ne.s32.totalorder %s89, %s92
      %p98 = scmp.eq.s32.totalorder %s21, 0
      %p99 = por %p97, %p98
      %p100 = scmp.ne.s32.totalorder %s89, %s92
      %p101 = scmp.eq.s32.totalorder %s26, 1
      %p102 = por %p100, %p101
      %p103 = scmp.ne.s32.totalorder %s92, %s93
      %p104 = scmp.eq.s32.totalorder %s26, 0
      %p105 = por %p103, %p104
      %p106 = scmp.ne.s32.totalorder %s92, %s93
      %p107 = scmp.eq.s32.totalorder %s27, 1
      %p108 = por %p106, %p107
      %p110 = scmp.ne.s32.totalorder %s93, %s109
      %p111 = scmp.eq.s32.totalorder %s27, 0
      %p112 = por %p110, %p111
      %s113 = ssub.s32 %s28, %s54
      %s114 = ssub.s32 %s29, %s50
      %s115 = sor.u32 %s113, %s114
      %s116 = ssub.s32 %s30, %s46
      %s117 = sor.u32 %s115, %s116
      %p118 = scmp.eq.s32.totalorder %s117, 0
      %s120 = sadd.s32 %s119, 1
      %s121 = scalar_select %p118, %s119, %s120
      %p124 = pneg %p118
      %p125 = scmp.eq.s32.totalorder %s21, 1
      %p126 = por %p124, %p125
      %p127 = scmp.ne.s32.totalorder %s119, %s122
      %p128 = scmp.eq.s32.totalorder %s21, 0
      %p129 = por %p127, %p128
      %p130 = scmp.ne.s32.totalorder %s119, %s122
      %p131 = scmp.eq.s32.totalorder %s26, 1
      %p132 = por %p130, %p131
      %p133 = scmp.ne.s32.totalorder %s122, %s123
      %p134 = scmp.eq.s32.totalorder %s26, 0
      %p135 = por %p133, %p134
      %p136 = scmp.ne.s32.totalorder %s122, %s123
      %p137 = scmp.eq.s32.totalorder %s27, 1
      %p138 = por %p136, %p137
      %p140 = scmp.ne.s32.totalorder %s123, %s139
      %p141 = scmp.eq.s32.totalorder %s27, 0
      %p142 = por %p140, %p141
      %s143 = ssub.s32 %s28, %s54
      %s144 = ssub.s32 %s29, %s50
      %s145 = sor.u32 %s143, %s144
      %s146 = ssub.s32 %s30, %s46
      %s147 = sor.u32 %s145, %s146
      %p148 = scmp.eq.s32.totalorder %s147, 0
      %s150 = sadd.s32 %s149, 1
      %s151 = scalar_select %p148, %s149, %s150
      %p154 = pneg %p148
      %p155 = scmp.eq.s32.totalorder %s21, 1
      %p156 = por %p154, %p155
      %p157 = scmp.ne.s32.totalorder %s149, %s152
      %p158 = scmp.eq.s32.totalorder %s21, 0
      %p159 = por %p157, %p158
      %p160 = scmp.ne.s32.totalorder %s149, %s152
      %p161 = scmp.eq.s32.totalorder %s26, 1
      %p162 = por %p160, %p161
      %p163 = scmp.ne.s32.totalorder %s152, %s153
      %p164 = scmp.eq.s32.totalorder %s26, 0
      %p165 = por %p163, %p164
      %p166 = scmp.ne.s32.totalorder %s152, %s153
      %p167 = scmp.eq.s32.totalorder %s27, 1
      %p168 = por %p166, %p167
      %p170 = scmp.ne.s32.totalorder %s153, %s169
      %p171 = scmp.eq.s32.totalorder %s27, 0
      %p172 = por %p170, %p171
      %s173 = ssub.s32 %s28, %s54
      %s174 = ssub.s32 %s29, %s50
      %s175 = sor.u32 %s173, %s174
      %s176 = ssub.s32 %s30, %s46
      %s177 = sor.u32 %s175, %s176
      %p178 = scmp.eq.s32.totalorder %s177, 0
      %s180 = sadd.s32 %s179, 1
      %s181 = scalar_select %p178, %s179, %s180
      %p184 = pneg %p178
      %p185 = scmp.eq.s32.totalorder %s21, 1
      %p186 = por %p184, %p185
      %p187 = scmp.ne.s32.totalorder %s179, %s182
      %p188 = scmp.eq.s32.totalorder %s21, 0
      %p189 = por %p187, %p188
      %p190 = scmp.ne.s32.totalorder %s179, %s182
      %p191 = scmp.eq.s32.totalorder %s26, 1
      %p192 = por %p190, %p191
      %p193 = scmp.ne.s32.totalorder %s182, %s183
      %p194 = scmp.eq.s32.totalorder %s26, 0
      %p195 = por %p193, %p194
      %p196 = scmp.ne.s32.totalorder %s182, %s183
      %p197 = scmp.eq.s32.totalorder %s27, 1
      %p198 = por %p196, %p197
      %p200 = scmp.ne.s32.totalorder %s183, %s199
      %p201 = scmp.eq.s32.totalorder %s27, 0
      %p202 = por %p200, %p201
      %p203 = scmp.le.s32.totalorder 1, %s21
      %p204 = scmp.lt.s32.totalorder %s21, 3
      %p205 = pnand %p203, %p204
      %p206 = pneg %p205
      // Predicated region
      $region9: #{tpu_custom_call.1} parent=5 // pred_check
        _
      $region10: #{tpu_custom_call.1} parent=5 // pred_check_branch
        %208 = sbr.rel (%p205) target = $region12
      $region11: #{tpu_custom_call.1} parent=5 // pred_region
        %s209 = ssub.s32 %s21, 1
        // Predicated region
        $region13: #{tpu_custom_call.1} parent=11 // pred_check
          %p210 = pneg %p105
        $region14: #{tpu_custom_call.1} parent=11 // pred_check_branch
          %212 = sbr.rel (%p210) target = $region16
        $region15: #{tpu_custom_call.1} parent=11 // pred_region
          %s213 = smul.u32 4, %s35
          %s215 = ssub.s32 1536, 1536
          %216 = vsyncadd [#allocation7], %s215
          %s217 = sadd.s32 %s34, %s213
          %s218 = smul.addr %s217, 128
          %s219 = scalar_lea.hbm %s1, %s218
          %s220 = sshll.u32 [#allocation6], 4
          %s221 = int_to_ptr.vmem [resolvable:$true] %s220
          %226 = dma.hbm_to_vmem [thread:$0]  %s219, 1536, %s221, [#allocation7], 128, 128, 8
        $region16: #{tpu_custom_call.1} parent=11 // pred_fallthru
          _
      $region12: #{tpu_custom_call.1} parent=5 // pred_fallthru
        _
      %p227 = scmp.lt.s32.totalorder %s21, 2
      // Predicated region
      $region17: #{tpu_custom_call.1} parent=5 // pred_check
        %p228 = pneg %p227
      $region18: #{tpu_custom_call.1} parent=5 // pred_check_branch
        %230 = sbr.rel (%p228) target = $region20
      $region19: #{tpu_custom_call.1} parent=5 // pred_region
        // Predicated region
        $region21: #{tpu_custom_call.1} parent=19 // pred_check
          %p231 = pneg %p71
        $region22: #{tpu_custom_call.1} parent=19 // pred_check_branch
          %233 = sbr.rel (%p231) target = $region24
        $region23: #{tpu_custom_call.1} parent=19 // pred_region
          %s234 = sand.u32 %s61, 1
          %s235 = scalar_lea.sflag [#allocation4], %s234
          %s236 = sand.u32 %s61, 1
          %s237 = smul.addr %s236, 8
          %s238 = scalar_lea.vmem [#allocation3], %s237
          %s240 = ssub.s32 128, 128
          %241 = vsyncadd %s235, %s240
          %s242 = sadd.s32 %s31, %s29
          %s243 = sadd.s32 %s242, %s28
          %s244 = smul.addr %s243, 128
          %s245 = scalar_lea.hbm %s0, %s244
          %s247 = sshll.u32 %s238, 4
          %s248 = int_to_ptr.vmem [resolvable:$true] %s247
          %250 = dma.hbm_to_vmem [thread:$0]  %s245, 128, %s248, %s235
        $region24: #{tpu_custom_call.1} parent=19 // pred_fallthru
          _
      $region20: #{tpu_custom_call.1} parent=5 // pred_fallthru
        _
      %p251 = scmp.le.s32.totalorder 1, %s21
      %p252 = scmp.lt.s32.totalorder %s21, 3
      %p253 = pnand %p251, %p252
      %p254 = pneg %p253
      // Predicated region
      $region25: #{tpu_custom_call.1} parent=5 // pred_check
        _
      $region26: #{tpu_custom_call.1} parent=5 // pred_check_branch
        %256 = sbr.rel (%p253) target = $region28
      $region27: #{tpu_custom_call.1} parent=5 // pred_region
        %s257 = ssub.s32 %s21, 1
        %s258 = sand.u32 %s64, 1
        %s259 = scalar_lea.sflag [#allocation4], %s258
        %s260 = sand.u32 %s64, 1
        %s261 = smul.addr %s260, 8
        %s262 = scalar_lea.vmem [#allocation3], %s261
        // Predicated region
        $region29: #{tpu_custom_call.1} parent=27 // pred_check
          %p263 = pneg %p77
        $region30: #{tpu_custom_call.1} parent=27 // pred_check_branch
          %265 = sbr.rel (%p263) target = $region32
        $region31: #{tpu_custom_call.1} parent=27 // pred_region
          %266 = dma.done %s259, 128
        $region32: #{tpu_custom_call.1} parent=27 // pred_fallthru
          _
        // Predicated region
        $region33: #{tpu_custom_call.1} parent=27 // pred_check
          %p267 = pneg %p105
        $region34: #{tpu_custom_call.1} parent=27 // pred_check_branch
          %269 = sbr.rel (%p267) target = $region36
        $region35: #{tpu_custom_call.1} parent=27 // pred_region
          %270 = dma.done [#allocation7], 1536
        $region36: #{tpu_custom_call.1} parent=27 // pred_fallthru
          _
        %s271 = sand.u32 %s64, 1
        %s272 = scalar_lea.sflag [#allocation4], %s271
        %s273 = sand.u32 %s64, 1
        %s274 = smul.addr %s273, 8
        %s275 = scalar_lea.vmem [#allocation3], %s274
        %p276 = pneg %p77
        %p277 = pneg %p74
        %p278 = pneg %p105
        %p279 = pneg %p102
        %p280 = pneg %p135
        %p281 = pneg %p132
        %s282 = sand.u32 %s122, 1
        %s283 = scalar_lea.sflag [#allocation5], %s282
        %s284 = sand.u32 %s122, 1
        %s285 = smul.addr %s284, 8
        %s286 = scalar_lea.vmem [#allocation8], %s285
        %p287 = pneg %p165
        %p288 = pneg %p162
        %s289 = sand.u32 %s26, 1
        %s290 = scalar_lea.sflag [#allocation10], %s289
        %s291 = sand.u32 %s152, 1
        %s292 = smul.addr %s291, 8
        %s293 = scalar_lea.vmem [#allocation9], %s292
        %p294 = pneg %p195
        %p295 = pneg %p192
        %s296 = sand.u32 %s26, 1
        %s297 = scalar_lea.sflag [#allocation10], %s296
        %s298 = sand.u32 %s182, 1
        %s299 = smul.addr %s298, 8
        %s300 = scalar_lea.vmem [#allocation11], %s299
        %s301 = smul.u32 4, %s35
        %p302 = scmp.eq.s32.totalorder %s35, 0
        // Predicated region
        $region37: #{tpu_custom_call.1} parent=27 // pred_check
          %p303 = pneg %p302
        $region38: #{tpu_custom_call.1} parent=27 // pred_check_branch
          %305 = sbr.rel (%p303) target = $region40
        $region39: #{tpu_custom_call.1} parent=27 // pred_region
          %vm306 = vcmask 261120
          %307 = vst.msk [vmem:[#allocation2] sm:$0xff] %vm306, 0.0
          %308 = vst.msk [vmem:[#allocation2 + $0x8] sm:$0xff] %vm306, 0.0
          %309 = vst.msk [vmem:[#allocation2 + $0x10] sm:$0xff] %vm306, 0.0
        $region40: #{tpu_custom_call.1} parent=27 // pred_fallthru
          _
        %v310 = vld [vmem:[%s262] sm:$0xff]
        %v311 = vld [vmem:[#allocation2] sm:$0xff]
        %v312 = vld [vmem:[#allocation6] sm:$0xff]
        %v313 = vld [vmem:[#allocation6 + $0x8] sm:$0xff]
        %v314 = vld [vmem:[#allocation6 + $0x10] sm:$0xff]
        %v315 = vld [vmem:[#allocation6 + $0x18] sm:$0xff]
        %vm316 = vcmask 261120
        %v318 = vsel %vm316, %v310, 0
        %320 = vmatprep.subr.mxu0 0.0
        %321 = vmatpush1.msra.mxu0 %v312
        %322 = vmatprep.subr.mxu0 0.0
        %323 = vmatpush1.msra.mxu0 %v313
        %324 = vmatprep.subr.mxu0 0.0
        %325 = vmatpush1.msra.mxu0 %v314
        %326 = vmatprep.subr.mxu0 0.0
        %327 = vmatpush1.msra.mxu0 %v315
        %328 = vmatprep.subr.mxu0 0.0
        %329 = vmatpush1.msra.mxu0 0.0
        %330 = vmatprep.subr.mxu0 0.0
        %331 = vmatpush1.msra.mxu0 0.0
        %332 = vmatprep.subr.mxu0 0.0
        %333 = vmatpush1.msra.mxu0 0.0
        %334 = vmatprep.subr.mxu0 0.0
        %335 = vmatpush1.msra.mxu0 0.0
        %336 = vmatprep.subr.mxu0 0.0
        %337 = vmatpush1.msra.mxu0 0.0
        %338 = vmatprep.subr.mxu0 0.0
        %339 = vmatpush1.msra.mxu0 0.0
        %340 = vmatprep.subr.mxu0 0.0
        %341 = vmatpush1.msra.mxu0 0.0
        %342 = vmatprep.subr.mxu0 0.0
        %343 = vmatpush1.msra.mxu0 0.0
        %344 = vmatprep.subr.mxu0 0.0
        %345 = vmatpush1.msra.mxu0 0.0
        %346 = vmatprep.subr.mxu0 0.0
        %347 = vmatpush1.msra.mxu0 0.0
        %348 = vmatprep.subr.mxu0 0.0
        %349 = vmatpush1.msra.mxu0 0.0
        %350 = vmatprep.subr.mxu0 0.0
        %351 = vmatpush1.msra.mxu0 0.0
        %352 = vmatprep.subr.mxu0 0.0
        %353 = vmatpush1.msra.mxu0 0.0
        %354 = vmatprep.subr.mxu0 0.0
        %355 = vmatpush1.msra.mxu0 0.0
        %356 = vmatprep.subr.mxu0 0.0
        %357 = vmatpush1.msra.mxu0 0.0
        %358 = vmatprep.subr.mxu0 0.0
        %359 = vmatpush1.msra.mxu0 0.0
        %360 = vmatprep.subr.mxu0 0.0
        %361 = vmatpush1.msra.mxu0 0.0
        %362 = vmatprep.subr.mxu0 0.0
        %363 = vmatpush1.msra.mxu0 0.0
        %364 = vmatprep.subr.mxu0 0.0
        %365 = vmatpush1.msra.mxu0 0.0
        %366 = vmatprep.subr.mxu0 0.0
        %367 = vmatpush1.msra.mxu0 0.0
        %368 = vmatprep.subr.mxu0 0.0
        %369 = vmatpush1.msra.mxu0 0.0
        %370 = vmatprep.subr.mxu0 0.0
        %371 = vmatpush1.msra.mxu0 0.0
        %372 = vmatprep.subr.mxu0 0.0
        %373 = vmatpush1.msra.mxu0 0.0
        %374 = vmatprep.subr.mxu0 0.0
        %375 = vmatpush1.msra.mxu0 0.0
        %376 = vmatprep.subr.mxu0 0.0
        %377 = vmatpush1.msra.mxu0 0.0
        %378 = vmatprep.subr.mxu0 0.0
        %379 = vmatpush1.msra.mxu0 0.0
        %380 = vmatprep.subr.mxu0 0.0
        %381 = vmatpush1.msra.mxu0 0.0
        %382 = vmatprep.subr.mxu0 0.0
        %383 = vmatpush1.msra.mxu0 0.0
        %384 = vmatprep.mubr.f32.mxu0 0.0
        %385 = vmatmul.mubr.f32.gmra.mrb[0].mxu0 %v318
        %v386 = vpop.f32.mrb[0].mxu0
        %v387 = vadd.f32 0.0, %v386
        %v388 = vpop.f32.mrb[0].mxu0
        %389 = vdwg.mxu0
        %v390 = vadd.f32 %v311, %v387
        %391 = vst.msk [vmem:[#allocation2] sm:$0xff] %vm316, %v390
        %s392 = scalar_lea.vmem [#allocation2], 8
        %v393 = vld [vmem:[%s392] sm:$0xff]
        %s394 = scalar_lea.vmem [#allocation6], 32
        %v395 = vld [vmem:[%s394] sm:$0xff]
        %v396 = vld [vmem:[%s394 + $0x8] sm:$0xff]
        %v397 = vld [vmem:[%s394 + $0x10] sm:$0xff]
        %v398 = vld [vmem:[%s394 + $0x18] sm:$0xff]
        %399 = vmatprep.subr.mxu0 0.0
        %400 = vmatpush1.msra.mxu0 %v395
        %401 = vmatprep.subr.mxu0 0.0
        %402 = vmatpush1.msra.mxu0 %v396
        %403 = vmatprep.subr.mxu0 0.0
        %404 = vmatpush1.msra.mxu0 %v397
        %405 = vmatprep.subr.mxu0 0.0
        %406 = vmatpush1.msra.mxu0 %v398
        %407 = vmatprep.subr.mxu0 0.0
        %408 = vmatpush1.msra.mxu0 0.0
        %409 = vmatprep.subr.mxu0 0.0
        %410 = vmatpush1.msra.mxu0 0.0
        %411 = vmatprep.subr.mxu0 0.0
        %412 = vmatpush1.msra.mxu0 0.0
        %413 = vmatprep.subr.mxu0 0.0
        %414 = vmatpush1.msra.mxu0 0.0
        %415 = vmatprep.subr.mxu0 0.0
        %416 = vmatpush1.msra.mxu0 0.0
        %417 = vmatprep.subr.mxu0 0.0
        %418 = vmatpush1.msra.mxu0 0.0
        %419 = vmatprep.subr.mxu0 0.0
        %420 = vmatpush1.msra.mxu0 0.0
        %421 = vmatprep.subr.mxu0 0.0
        %422 = vmatpush1.msra.mxu0 0.0
        %423 = vmatprep.subr.mxu0 0.0
        %424 = vmatpush1.msra.mxu0 0.0
        %425 = vmatprep.subr.mxu0 0.0
        %426 = vmatpush1.msra.mxu0 0.0
        %427 = vmatprep.subr.mxu0 0.0
        %428 = vmatpush1.msra.mxu0 0.0
        %429 = vmatprep.subr.mxu0 0.0
        %430 = vmatpush1.msra.mxu0 0.0
        %431 = vmatprep.subr.mxu0 0.0
        %432 = vmatpush1.msra.mxu0 0.0
        %433 = vmatprep.subr.mxu0 0.0
        %434 = vmatpush1.msra.mxu0 0.0
        %435 = vmatprep.subr.mxu0 0.0
        %436 = vmatpush1.msra.mxu0 0.0
        %437 = vmatprep.subr.mxu0 0.0
        %438 = vmatpush1.msra.mxu0 0.0
        %439 = vmatprep.subr.mxu0 0.0
        %440 = vmatpush1.msra.mxu0 0.0
        %441 = vmatprep.subr.mxu0 0.0
        %442 = vmatpush1.msra.mxu0 0.0
        %443 = vmatprep.subr.mxu0 0.0
        %444 = vmatpush1.msra.mxu0 0.0
        %445 = vmatprep.subr.mxu0 0.0
        %446 = vmatpush1.msra.mxu0 0.0
        %447 = vmatprep.subr.mxu0 0.0
        %448 = vmatpush1.msra.mxu0 0.0
        %449 = vmatprep.subr.mxu0 0.0
        %450 = vmatpush1.msra.mxu0 0.0
        %451 = vmatprep.subr.mxu0 0.0
        %452 = vmatpush1.msra.mxu0 0.0
        %453 = vmatprep.subr.mxu0 0.0
        %454 = vmatpush1.msra.mxu0 0.0
        %455 = vmatprep.subr.mxu0 0.0
        %456 = vmatpush1.msra.mxu0 0.0
        %457 = vmatprep.subr.mxu0 0.0
        %458 = vmatpush1.msra.mxu0 0.0
        %459 = vmatprep.subr.mxu0 0.0
        %460 = vmatpush1.msra.mxu0 0.0
        %461 = vmatprep.subr.mxu0 0.0
        %462 = vmatpush1.msra.mxu0 0.0
        %463 = vmatprep.mubr.f32.mxu0 0.0
        %464 = vmatmul.mubr.f32.gmra.mrb[0].mxu0 %v318
        %v465 = vpop.f32.mrb[0].mxu0
        %v466 = vadd.f32 0.0, %v465
        %v467 = vpop.f32.mrb[0].mxu0
        %468 = vdwg.mxu0
        %v469 = vadd.f32 %v393, %v466
        %470 = vst.msk [vmem:[%s392] sm:$0xff] %vm316, %v469
        %s471 = scalar_lea.vmem [#allocation2], 16
        %v472 = vld [vmem:[%s471] sm:$0xff]
        %s473 = scalar_lea.vmem [#allocation6], 64
        %v474 = vld [vmem:[%s473] sm:$0xff]
        %v475 = vld [vmem:[%s473 + $0x8] sm:$0xff]
        %v476 = vld [vmem:[%s473 + $0x10] sm:$0xff]
        %v477 = vld [vmem:[%s473 + $0x18] sm:$0xff]
        %478 = vmatprep.subr.mxu0 0.0
        %479 = vmatpush1.msra.mxu0 %v474
        %480 = vmatprep.subr.mxu0 0.0
        %481 = vmatpush1.msra.mxu0 %v475
        %482 = vmatprep.subr.mxu0 0.0
        %483 = vmatpush1.msra.mxu0 %v476
        %484 = vmatprep.subr.mxu0 0.0
        %485 = vmatpush1.msra.mxu0 %v477
        %486 = vmatprep.subr.mxu0 0.0
        %487 = vmatpush1.msra.mxu0 0.0
        %488 = vmatprep.subr.mxu0 0.0
        %489 = vmatpush1.msra.mxu0 0.0
        %490 = vmatprep.subr.mxu0 0.0
        %491 = vmatpush1.msra.mxu0 0.0
        %492 = vmatprep.subr.mxu0 0.0
        %493 = vmatpush1.msra.mxu0 0.0
        %494 = vmatprep.subr.mxu0 0.0
        %495 = vmatpush1.msra.mxu0 0.0
        %496 = vmatprep.subr.mxu0 0.0
        %497 = vmatpush1.msra.mxu0 0.0
        %498 = vmatprep.subr.mxu0 0.0
        %499 = vmatpush1.msra.mxu0 0.0
        %500 = vmatprep.subr.mxu0 0.0
        %501 = vmatpush1.msra.mxu0 0.0
        %502 = vmatprep.subr.mxu0 0.0
        %503 = vmatpush1.msra.mxu0 0.0
        %504 = vmatprep.subr.mxu0 0.0
        %505 = vmatpush1.msra.mxu0 0.0
        %506 = vmatprep.subr.mxu0 0.0
        %507 = vmatpush1.msra.mxu0 0.0
        %508 = vmatprep.subr.mxu0 0.0
        %509 = vmatpush1.msra.mxu0 0.0
        %510 = vmatprep.subr.mxu0 0.0
        %511 = vmatpush1.msra.mxu0 0.0
        %512 = vmatprep.subr.mxu0 0.0
        %513 = vmatpush1.msra.mxu0 0.0
        %514 = vmatprep.subr.mxu0 0.0
        %515 = vmatpush1.msra.mxu0 0.0
        %516 = vmatprep.subr.mxu0 0.0
        %517 = vmatpush1.msra.mxu0 0.0
        %518 = vmatprep.subr.mxu0 0.0
        %519 = vmatpush1.msra.mxu0 0.0
        %520 = vmatprep.subr.mxu0 0.0
        %521 = vmatpush1.msra.mxu0 0.0
        %522 = vmatprep.subr.mxu0 0.0
        %523 = vmatpush1.msra.mxu0 0.0
        %524 = vmatprep.subr.mxu0 0.0
        %525 = vmatpush1.msra.mxu0 0.0
        %526 = vmatprep.subr.mxu0 0.0
        %527 = vmatpush1.msra.mxu0 0.0
        %528 = vmatprep.subr.mxu0 0.0
        %529 = vmatpush1.msra.mxu0 0.0
        %530 = vmatprep.subr.mxu0 0.0
        %531 = vmatpush1.msra.mxu0 0.0
        %532 = vmatprep.subr.mxu0 0.0
        %533 = vmatpush1.msra.mxu0 0.0
        %534 = vmatprep.subr.mxu0 0.0
        %535 = vmatpush1.msra.mxu0 0.0
        %536 = vmatprep.subr.mxu0 0.0
        %537 = vmatpush1.msra.mxu0 0.0
        %538 = vmatprep.subr.mxu0 0.0
        %539 = vmatpush1.msra.mxu0 0.0
        %540 = vmatprep.subr.mxu0 0.0
        %541 = vmatpush1.msra.mxu0 0.0
        %542 = vmatprep.mubr.f32.mxu0 0.0
        %543 = vmatmul.mubr.f32.gmra.mrb[0].mxu0 %v318
        %v544 = vpop.f32.mrb[0].mxu0
        %v545 = vadd.f32 0.0, %v544
        %v546 = vpop.f32.mrb[0].mxu0
        %547 = vdwg.mxu0
        %v548 = vadd.f32 %v472, %v545
        %549 = vst.msk [vmem:[%s471] sm:$0xff] %vm316, %v548
        // Predicated region
        $region41: #{tpu_custom_call.1} parent=27 // pred_check
          %p550 = pneg %p302
        $region42: #{tpu_custom_call.1} parent=27 // pred_check_branch
          %552 = sbr.rel (%p550) target = $region44
        $region43: #{tpu_custom_call.1} parent=27 // pred_region
          %v553 = vld [vmem:[#allocation2] sm:$0xff]
          %554 = vst.msk [vmem:[%s286] sm:$0xff] %vm316, %v553
          %v555 = vld [vmem:[%s392] sm:$0xff]
          %556 = vst.msk [vmem:[%s293] sm:$0xff] %vm316, %v555
          %v557 = vld [vmem:[%s471] sm:$0xff]
          %558 = vst.msk [vmem:[%s300] sm:$0xff] %vm316, %v557
        $region44: #{tpu_custom_call.1} parent=27 // pred_fallthru
          _
        %s559 = sand.u32 %s122, 1
        %s560 = scalar_lea.sflag [#allocation5], %s559
        %s561 = sand.u32 %s122, 1
        %s562 = smul.addr %s561, 8
        %s563 = scalar_lea.vmem [#allocation8], %s562
        %s564 = sand.u32 %s26, 1
        %s565 = scalar_lea.sflag [#allocation10], %s564
        %s566 = sand.u32 %s152, 1
        %s567 = smul.addr %s566, 8
        %s568 = scalar_lea.vmem [#allocation9], %s567
        %s569 = sand.u32 %s26, 1
        %s570 = scalar_lea.sflag [#allocation10], %s569
        %s571 = sand.u32 %s182, 1
        %s572 = smul.addr %s571, 8
        %s573 = scalar_lea.vmem [#allocation11], %s572
        // Predicated region
        $region45: #{tpu_custom_call.1} parent=27 // pred_check
          %p574 = pneg %p132
        $region46: #{tpu_custom_call.1} parent=27 // pred_check_branch
          %576 = sbr.rel (%p574) target = $region48
        $region47: #{tpu_custom_call.1} parent=27 // pred_region
          %s578 = ssub.s32 128, 128
          %579 = vsyncadd %s560, %s578
          %s580 = sadd.s32 %s34, %s33
          %s581 = sadd.s32 %s580, %s32
          %s582 = smul.addr %s581, 128
          %s583 = scalar_lea.hbm %s2, %s582
          %s585 = sshll.u32 %s563, 4
          %s586 = int_to_ptr.vmem [resolvable:$true] %s585
          %588 = dma.vmem_to_hbm [thread:$0]  %s586, 128, %s583, %s560
        $region48: #{tpu_custom_call.1} parent=27 // pred_fallthru
          _
        // Predicated region
        $region49: #{tpu_custom_call.1} parent=27 // pred_check
          %p589 = pneg %p162
        $region50: #{tpu_custom_call.1} parent=27 // pred_check_branch
          %591 = sbr.rel (%p589) target = $region52
        $region51: #{tpu_custom_call.1} parent=27 // pred_region
          %s593 = ssub.s32 128, 128
          %594 = vsyncadd %s565, %s593
          %s595 = sadd.s32 %s34, %s33
          %s596 = sadd.s32 %s595, %s32
          %s597 = smul.addr %s596, 128
          %s598 = scalar_lea.hbm %s3, %s597
          %s600 = sshll.u32 %s568, 4
          %s601 = int_to_ptr.vmem [resolvable:$true] %s600
          %603 = dma.vmem_to_hbm [thread:$0]  %s601, 128, %s598, %s565
        $region52: #{tpu_custom_call.1} parent=27 // pred_fallthru
          _
        // Predicated region
        $region53: #{tpu_custom_call.1} parent=27 // pred_check
          %p604 = pneg %p192
        $region54: #{tpu_custom_call.1} parent=27 // pred_check_branch
          %606 = sbr.rel (%p604) target = $region56
        $region55: #{tpu_custom_call.1} parent=27 // pred_region
          %s608 = ssub.s32 128, 128
          %609 = vsyncadd %s570, %s608
          %s610 = sadd.s32 %s34, %s33
          %s611 = sadd.s32 %s610, %s32
          %s612 = smul.addr %s611, 128
          %s613 = scalar_lea.hbm %s4, %s612
          %s615 = sshll.u32 %s573, 4
          %s616 = int_to_ptr.vmem [resolvable:$true] %s615
          %618 = dma.vmem_to_hbm [thread:$0]  %s616, 128, %s613, %s570
        $region56: #{tpu_custom_call.1} parent=27 // pred_fallthru
          _
      $region28: #{tpu_custom_call.1} parent=5 // pred_fallthru
        _
      %p619 = scmp.le.s32.totalorder 2, %s21
      // Predicated region
      $region57: #{tpu_custom_call.1} parent=5 // pred_check
        %p620 = pneg %p619
      $region58: #{tpu_custom_call.1} parent=5 // pred_check_branch
        %622 = sbr.rel (%p620) target = $region60
      $region59: #{tpu_custom_call.1} parent=5 // pred_region
        %s623 = ssub.s32 %s21, 2
        // Predicated region
        $region61: #{tpu_custom_call.1} parent=59 // pred_check
          %p624 = pneg %p138
        $region62: #{tpu_custom_call.1} parent=59 // pred_check_branch
          %626 = sbr.rel (%p624) target = $region64
        $region63: #{tpu_custom_call.1} parent=59 // pred_region
          %s627 = sand.u32 %s123, 1
          %s628 = scalar_lea.sflag [#allocation5], %s627
          %s629 = sand.u32 %s123, 1
          %s630 = smul.addr %s629, 8
          %s631 = scalar_lea.vmem [#allocation8], %s630
          %632 = dma.done %s628, 128
        $region64: #{tpu_custom_call.1} parent=59 // pred_fallthru
          _
        // Predicated region
        $region65: #{tpu_custom_call.1} parent=59 // pred_check
          %p633 = pneg %p168
        $region66: #{tpu_custom_call.1} parent=59 // pred_check_branch
          %635 = sbr.rel (%p633) target = $region68
        $region67: #{tpu_custom_call.1} parent=59 // pred_region
          %s636 = sand.u32 %s27, 1
          %s637 = scalar_lea.sflag [#allocation10], %s636
          %s638 = sand.u32 %s153, 1
          %s639 = smul.addr %s638, 8
          %s640 = scalar_lea.vmem [#allocation9], %s639
          %641 = dma.done %s637, 128
        $region68: #{tpu_custom_call.1} parent=59 // pred_fallthru
          _
        // Predicated region
        $region69: #{tpu_custom_call.1} parent=59 // pred_check
          %p642 = pneg %p198
        $region70: #{tpu_custom_call.1} parent=59 // pred_check_branch
          %644 = sbr.rel (%p642) target = $region72
        $region71: #{tpu_custom_call.1} parent=59 // pred_region
          %s645 = sand.u32 %s27, 1
          %s646 = scalar_lea.sflag [#allocation10], %s645
          %s647 = sand.u32 %s183, 1
          %s648 = smul.addr %s647, 8
          %s649 = scalar_lea.vmem [#allocation11], %s648
          %650 = dma.done %s646, 128
        $region72: #{tpu_custom_call.1} parent=59 // pred_fallthru
          _
      $region60: #{tpu_custom_call.1} parent=5 // pred_fallthru
        _
    $region6: #{tpu_custom_call.1} parent=1 // loop_footer
      %s25 = sadd.s32 1, %s21
    $region7: #{tpu_custom_call.1} parent=1 // loop_footer_branch
      %20 = sbr.rel target = $region3
    $region8: #{tpu_custom_call.1} parent=1 // loop_exit
      _
    %651 = vsyncpa [#allocation4], 1
    %s652 = scalar_lea.sflag [#allocation4], 1
    %653 = vsyncpa %s652, 1
    %654 = vsyncpa [#allocation7], 1
    %655 = vsyncpa [#allocation5], 1
    %s656 = scalar_lea.sflag [#allocation5], 1
    %657 = vsyncpa %s656, 1
    %658 = vsyncpa [#allocation10], 1
    %s659 = scalar_lea.sflag [#allocation10], 1
    %660 = vsyncpa %s659, 1

</llo_original>
